<compile_context>
chip_gen: v5e
topology: v5e:2x2
jax: 0.10.0
libtpu: 0.0.40
codegen_flags: <defaults>
</compile_context>

<pallas_src>
import functools

import jax
import jax.numpy as jnp
import numpy as np
from jax import lax
from jax.experimental import pallas as pl
from jax.experimental.pallas import tpu as pltpu

K_IN = 192          # 3*8*8 flattened input features (native, no padding)
POOL_COLS = 16      # 9 pool positions (cols 0..8) padded to 16 columns
N_OFFSETS = 4       # 2x2 max-pool window offsets
WC_COLS = N_OFFSETS * POOL_COLS   # 64 fused output columns


# ----------------------------- Pallas kernel ------------------------------- #
def net_kernel(x_ref, wc_ref, wf_ref, cb_ref, fb_ref, out_ref):
    # x_ref:  (TILE_N, 192) f32   raw flattened NCHW activations
    # wc_ref: (192, 64)     bf16  4 scattered conv-weight slabs, 16 cols each
    # wf_ref: (16, 2)       bf16  fc1 weight in rows 0..8, zeros elsewhere
    # cb_ref: (1, 1)        f32   conv bias
    # fb_ref: (1, 2)        f32   fc1 bias
    # out_ref:(TILE_N, 2)   f32
    x = x_ref[...].astype(jnp.bfloat16)               # cast on VALU (free slack)
    m = jnp.dot(x, wc_ref[...], preferred_element_type=jnp.float32)  # (tile, 64)
    # max over the 4 pool-window offsets (static 16-column slices)
    p = jnp.maximum(jnp.maximum(m[:, 0:16], m[:, 16:32]),
                    jnp.maximum(m[:, 32:48], m[:, 48:64]))
    # conv bias BEFORE the ReLU; relu(max_r(z_r + b)) == maxpool(relu(conv + b))
    pooled = jnp.maximum(p + cb_ref[...], 0.0)         # (tile, 16)
    # fc1 + bias + ReLU (cols 9..15 of pooled hit zero rows of wf -> no effect)
    y = jnp.dot(pooled.astype(wf_ref.dtype), wf_ref[...],
                preferred_element_type=jnp.float32) + fb_ref[...]
    out_ref[...] = jnp.maximum(y, 0.0)


# --------------------------- host-side weight prep -------------------------- #
def _round_up(n, m):
    return ((n + m - 1) // m) * m


def build_weights(conv_w, conv_b, fc_w, fc_b):
    """One-time, pure-numpy weight preparation (hoisted out of the call path).

    wc (192, 64): column r*16 + q holds the conv taps for pool-window offset
    r = (di, dj) and pool output position q = pi*3 + pj, scattered to their
    receptive-field input rows (row = c*64 + (2*pi+di+ki)*8 + (2*pj+dj+kj)).
    wf (16, 2):  fc1 weight in rows 0..8, zeros elsewhere.
    """
    conv_w = np.asarray(conv_w, dtype=np.float32)   # OIHW (1, 3, 3, 3)
    conv_b = np.asarray(conv_b, dtype=np.float32)   # (1,)
    fc_w = np.asarray(fc_w, dtype=np.float32)       # (2, 9)
    fc_b = np.asarray(fc_b, dtype=np.float32)       # (2,)

    w_flat = conv_w.reshape(27)                     # (c, kh, kw) flat
    wc = np.zeros((K_IN, WC_COLS), dtype=np.float32)
    for di in range(2):
        for dj in range(2):
            r = di * 2 + dj
            for pi in range(3):
                for pj in range(3):
                    q = pi * 3 + pj
                    oi, oj = 2 * pi + di, 2 * pj + dj
                    k = 0
                    for c in range(3):
                        for ki in range(3):
                            for kj in range(3):
                                row = c * 64 + (oi + ki) * 8 + (oj + kj)
                                wc[row, r * POOL_COLS + q] = w_flat[k]
                                k += 1

    wf = np.zeros((POOL_COLS, 2), dtype=np.float32)
    wf[0:9, :] = fc_w.T

    return (jnp.asarray(wc, dtype=jnp.bfloat16),
            jnp.asarray(wf, dtype=jnp.bfloat16),
            jnp.asarray(conv_b.reshape(1, 1), dtype=jnp.float32),
            jnp.asarray(fc_b.reshape(1, 2), dtype=jnp.float32))


# ------------------------------- forward ------------------------------------ #
@functools.partial(jax.jit, static_argnames=("tile_n",))
def net_forward(x, wc, wf, cb, fb, *, tile_n=4096):
    n = x.shape[0]
    x_flat = x.reshape(n, K_IN)                      # free (contiguous) reshape
    tile = min(tile_n, _round_up(n, 8))              # rows per grid step (mult of 8)
    n_pad = _round_up(n, tile)
    if n_pad != n:
        x_flat = jnp.pad(x_flat, ((0, n_pad - n), (0, 0)))

    out = pl.pallas_call(
        net_kernel,
        out_shape=jax.ShapeDtypeStruct((n_pad, 2), jnp.float32),
        grid_spec=pltpu.PrefetchScalarGridSpec(
            num_scalar_prefetch=0,
            grid=(n_pad // tile,),
            in_specs=[
                pl.BlockSpec((tile, K_IN), lambda i: (i, 0)),
                pl.BlockSpec((K_IN, WC_COLS), lambda i: (0, 0)),
                pl.BlockSpec((POOL_COLS, 2), lambda i: (0, 0)),
                pl.BlockSpec((1, 1), lambda i: (0, 0)),
                pl.BlockSpec((1, 2), lambda i: (0, 0)),
            ],
            out_specs=pl.BlockSpec((tile, 2), lambda i: (i, 0)),
        ),
        compiler_params=pltpu.CompilerParams(
            # "parallel" shards the batch axis across TensorCores where the
            # chip has more than one (v7x); no-op on v5e/v6e.
            dimension_semantics=("parallel",),
            vmem_limit_bytes=32 * 1024 * 1024,       # safe on v7x's 64 MiB VMEM
        ),
    )(x_flat, wc, wf, cb, fb)
    return out[:n]


# ------------------------------ reference ----------------------------------- #
def net_reference(x, conv_w, conv_b, fc_w, fc_b):
    """Pure-JAX f32 reference matching PyTorch semantics."""
    c = lax.conv_general_dilated(x, conv_w, (1, 1), "VALID",
                                 dimension_numbers=("NCHW", "OIHW", "NCHW"))
    c = jnp.maximum(c + conv_b.reshape(1, 1, 1, 1), 0.0)          # (N,1,6,6)
    p = lax.reduce_window(c, -jnp.inf, lax.max,
                          (1, 1, 2, 2), (1, 1, 2, 2), "VALID")    # (N,1,3,3)
    return jnp.maximum(p.reshape(-1, 9) @ fc_w.T + fc_b, 0.0)


# --------------------------------- main -------------------------------------- #
if __name__ == "__main__":
    key = jax.random.PRNGKey(0)
    k_x, k_cw, k_cb, k_fw, k_fb = jax.random.split(key, 5)

    N = 2
    # input spatial = 8: conv(3x3, valid) -> 6, pool(2,2) -> 3, i.e. 1*3*3 = 9
    x = jax.random.normal(k_x, (N, 3, 8, 8), dtype=jnp.float32)

    conv_w = jax.random.normal(k_cw, (1, 3, 3, 3), dtype=jnp.float32) * 0.2
    conv_b = jax.random.normal(k_cb, (1,), dtype=jnp.float32) * 0.1
    fc_w = jax.random.normal(k_fw, (2, 9), dtype=jnp.float32) * 0.3
    fc_b = jax.random.normal(k_fb, (2,), dtype=jnp.float32) * 0.1

    # one-time weight prep (hoisted out of the per-call path)
    wc, wf, cb, fb = build_weights(conv_w, conv_b, fc_w, fc_b)

    out = jax.block_until_ready(net_forward(x, wc, wf, cb, fb))
    assert out.shape == (N, 2), out.shape

    # Reference in f32 with the same bf16 operand rounding the kernel applies to
    # its MXU inputs (in-kernel accumulation / biases stay f32).
    rd = lambda a: a.astype(jnp.bfloat16).astype(jnp.float32)
    ref = net_reference(rd(x), rd(conv_w), conv_b, rd(fc_w), fc_b)
    assert jnp.allclose(out, ref, atol=3e-2, rtol=3e-2), (out, ref)

    # Exercise the multi-step grid + batch-padding path as well.
    N2 = 50
    x2 = jax.random.normal(jax.random.PRNGKey(1), (N2, 3, 8, 8), dtype=jnp.float32)
    out2 = jax.block_until_ready(net_forward(x2, wc, wf, cb, fb, tile_n=16))
    ref2 = net_reference(rd(x2), rd(conv_w), conv_b, rd(fc_w), fc_b)
    assert out2.shape == (N2, 2), out2.shape
    assert jnp.allclose(out2, ref2, atol=3e-2, rtol=3e-2), (out2, ref2)

    print("KERNEL_OK")
</pallas_src>

<mosaic_0001>
module attributes {stable_mosaic.version = 11 : i64} {
  func.func @net_kernel(%arg0: i32, %arg1: memref<8x192xf32, #tpu.memory_space<vmem>>, %arg2: memref<192x64xbf16, #tpu.memory_space<vmem>>, %arg3: memref<16x2xbf16, #tpu.memory_space<vmem>>, %arg4: memref<1x1xf32, #tpu.memory_space<vmem>>, %arg5: memref<1x2xf32, #tpu.memory_space<vmem>>, %arg6: memref<8x2xf32, #tpu.memory_space<vmem>>) attributes {dimension_semantics = [#tpu.dimension_semantics<parallel>], iteration_bounds = array<i64: 1>, scalar_prefetch = 0 : i64, scratch_operands = 0 : i64, tpu.core_type = #tpu.core_type<tc>, window_params = [{transform_indices = @transform_0, window_bounds = array<i64: 8, 192>}, {pipeline_mode = #tpu.pipeline_mode<synchronous>, transform_indices = @transform_1, window_bounds = array<i64: 192, 64>}, {pipeline_mode = #tpu.pipeline_mode<synchronous>, transform_indices = @transform_2, window_bounds = array<i64: 16, 2>}, {pipeline_mode = #tpu.pipeline_mode<synchronous>, transform_indices = @transform_3, window_bounds = array<i64: 1, 1>}, {pipeline_mode = #tpu.pipeline_mode<synchronous>, transform_indices = @transform_4, window_bounds = array<i64: 1, 2>}, {transform_indices = @transform_5, window_bounds = array<i64: 8, 2>}]} {
    %c0 = arith.constant 0 : index
    %c0_0 = arith.constant 0 : index
    %0 = vector.load %arg1[%c0, %c0_0] : memref<8x192xf32, #tpu.memory_space<vmem>>, vector<8x192xf32>
    %1 = arith.truncf %0 : vector<8x192xf32> to vector<8x192xbf16>
    %c0_1 = arith.constant 0 : index
    %c0_2 = arith.constant 0 : index
    %2 = vector.load %arg2[%c0_1, %c0_2] : memref<192x64xbf16, #tpu.memory_space<vmem>>, vector<192x64xbf16>
    %cst = arith.constant dense<0.000000e+00> : vector<8x64xf32>
    %3 = tpu.matmul %1, %2, %cst {dimension_numbers = #tpu.dot_dimension_numbers<[1], [0], [0], [1], [0, 0, 1, 1], [], []>} : vector<8x192xbf16>, vector<192x64xbf16>, vector<8x64xf32> -> vector<8x64xf32>
    %4 = vector.extract_strided_slice %3 {offsets = [0, 0], sizes = [8, 16], strides = [1, 1]} : vector<8x64xf32> to vector<8x16xf32>
    %5 = vector.extract_strided_slice %3 {offsets = [0, 16], sizes = [8, 16], strides = [1, 1]} : vector<8x64xf32> to vector<8x16xf32>
    %6 = arith.maximumf %4, %5 : vector<8x16xf32>
    %7 = vector.extract_strided_slice %3 {offsets = [0, 32], sizes = [8, 16], strides = [1, 1]} : vector<8x64xf32> to vector<8x16xf32>
    %8 = vector.extract_strided_slice %3 {offsets = [0, 48], sizes = [8, 16], strides = [1, 1]} : vector<8x64xf32> to vector<8x16xf32>
    %9 = arith.maximumf %7, %8 : vector<8x16xf32>
    %10 = arith.maximumf %6, %9 : vector<8x16xf32>
    %c0_3 = arith.constant 0 : index
    %c0_4 = arith.constant 0 : index
    %11 = vector.load %arg4[%c0_3, %c0_4] : memref<1x1xf32, #tpu.memory_space<vmem>>, vector<1x1xf32>
    %12 = vector.broadcast %11 : vector<1x1xf32> to vector<8x16xf32>
    %13 = arith.addf %10, %12 : vector<8x16xf32>
    %cst_5 = arith.constant 0.000000e+00 : f32
    %14 = vector.broadcast %cst_5 : f32 to vector<8x16xf32>
    %15 = arith.maximumf %13, %14 : vector<8x16xf32>
    %16 = arith.truncf %15 : vector<8x16xf32> to vector<8x16xbf16>
    %c0_6 = arith.constant 0 : index
    %c0_7 = arith.constant 0 : index
    %17 = vector.load %arg3[%c0_6, %c0_7] : memref<16x2xbf16, #tpu.memory_space<vmem>>, vector<16x2xbf16>
    %cst_8 = arith.constant dense<0.000000e+00> : vector<8x2xf32>
    %18 = tpu.matmul %16, %17, %cst_8 {dimension_numbers = #tpu.dot_dimension_numbers<[1], [0], [0], [1], [0, 0, 1, 1], [], []>} : vector<8x16xbf16>, vector<16x2xbf16>, vector<8x2xf32> -> vector<8x2xf32>
    %c0_9 = arith.constant 0 : index
    %c0_10 = arith.constant 0 : index
    %19 = vector.load %arg5[%c0_9, %c0_10] : memref<1x2xf32, #tpu.memory_space<vmem>>, vector<1x2xf32>
    %20 = vector.broadcast %19 : vector<1x2xf32> to vector<8x2xf32>
    %21 = arith.addf %18, %20 : vector<8x2xf32>
    %cst_11 = arith.constant 0.000000e+00 : f32
    %22 = vector.broadcast %cst_11 : f32 to vector<8x2xf32>
    %23 = arith.maximumf %21, %22 : vector<8x2xf32>
    %c0_12 = arith.constant 0 : index
    %c0_13 = arith.constant 0 : index
    %24 = vector.load %arg6[%c0_12, %c0_13] : memref<8x2xf32, #tpu.memory_space<vmem>>, vector<8x2xf32>
    tpu.vector_store %arg6[%c0_12, %c0_13], %23 {strides = array<i32>} : memref<8x2xf32, #tpu.memory_space<vmem>>, vector<8x2xf32>,
    return
  }
  func.func @transform_0(%arg0: i32) -> (i32, i32) {
    %c0_i32 = arith.constant 0 : i32
    %c0_i32_0 = arith.constant 0 : i32
    return %arg0, %c0_i32 : i32, i32
  }
  func.func @transform_1(%arg0: i32) -> (i32, i32) {
    %c0_i32 = arith.constant 0 : i32
    %c0_i32_0 = arith.constant 0 : i32
    %c0_i32_1 = arith.constant 0 : i32
    return %c0_i32, %c0_i32_0 : i32, i32
  }
  func.func @transform_2(%arg0: i32) -> (i32, i32) {
    %c0_i32 = arith.constant 0 : i32
    %c0_i32_0 = arith.constant 0 : i32
    %c0_i32_1 = arith.constant 0 : i32
    return %c0_i32, %c0_i32_0 : i32, i32
  }
  func.func @transform_3(%arg0: i32) -> (i32, i32) {
    %c0_i32 = arith.constant 0 : i32
    %c0_i32_0 = arith.constant 0 : i32
    %c0_i32_1 = arith.constant 0 : i32
    return %c0_i32, %c0_i32_0 : i32, i32
  }
  func.func @transform_4(%arg0: i32) -> (i32, i32) {
    %c0_i32 = arith.constant 0 : i32
    %c0_i32_0 = arith.constant 0 : i32
    %c0_i32_1 = arith.constant 0 : i32
    return %c0_i32, %c0_i32_0 : i32, i32
  }
  func.func @transform_5(%arg0: i32) -> (i32, i32) {
    %c0_i32 = arith.constant 0 : i32
    %c0_i32_0 = arith.constant 0 : i32
    return %arg0, %c0_i32 : i32, i32
  }
}

</mosaic_0001>

<llo_original>
// kernel: net_forward.1
$region0: #{net_forward.1}
  #allocation0 [shape = 'u32[]', space=smem, size = 0x4, offset = 0x4, fixed_abs, tag = 'smem constant byte address 0x4 - core index']
  #allocation1 [shape = 'u32[72,128]{1,0:T(1,128)}', space=vmem, size = 0x9000, scoped, tag = 'internal scratch']
  #allocation2 [shape = 'f32[1,1]{1,0:T(1,128)S(1)}', space=vmem, size = 0x200, scoped, tag = 'scoped memory for net_forward.1']
  %s0 = inlined_call_operand.vmem [shape: f32[8,192], index: 0, kind: input, shape index: {}]
  %s1 = inlined_call_operand.vmem [shape: bf16[192,64], index: 1, kind: input, shape index: {}]
  %s2 = inlined_call_operand.vmem [shape: bf16[16,2], index: 2, kind: input, shape index: {}]
  %s3 = inlined_call_operand.<no memory space> [shape: f32[1,1], index: 3, kind: input, shape index: {}]
  %s4 = inlined_call_operand.vmem [shape: f32[1,2], index: 4, kind: input, shape index: {}]
  %s5 = inlined_call_operand.vmem [shape: f32[8,2], index: 5, kind: output, shape index: {}]
  %s6 = sld [smem:[#allocation0]]
  $region30: #{net_forward.1} parent=0
    _
  %s8 = ssub.s32 1, %s6
  %s9 = scalar_select 0, %s8, %s6
  %v10 = vstv %s3
  %11 = vst [vmem:[#allocation2] sm:$0x1] %v10
  // Predicated region
  $region2: #{net_forward.1} parent=0 // pred_check
    _
  $region3: #{net_forward.1} parent=0 // pred_check_branch
    %13 = sbr.rel (0) target = $region5
  $region4: #{net_forward.1} parent=0 // pred_region
    _
  $region5: #{net_forward.1} parent=0 // pred_fallthru
    _
  // Predicated region
  $region6: #{net_forward.1} parent=0 // pred_check
    _
  $region7: #{net_forward.1} parent=0 // pred_check_branch
    %15 = sbr.rel (0) target = $region9
  $region8: #{net_forward.1} parent=0 // pred_region
    _
  $region9: #{net_forward.1} parent=0 // pred_fallthru
    _
  // Predicated region
  $region10: #{net_forward.1} parent=0 // pred_check
    _
  $region11: #{net_forward.1} parent=0 // pred_check_branch
    %17 = sbr.rel (0) target = $region13
  $region12: #{net_forward.1} parent=0 // pred_region
    _
  $region13: #{net_forward.1} parent=0 // pred_fallthru
    _
  // Predicated region
  $region14: #{net_forward.1} parent=0 // pred_check
    _
  $region15: #{net_forward.1} parent=0 // pred_check_branch
    %19 = sbr.rel (0) target = $region17
  $region16: #{net_forward.1} parent=0 // pred_region
    _
  $region17: #{net_forward.1} parent=0 // pred_fallthru
    _
  // Predicated region
  $region18: #{net_forward.1} parent=0 // pred_check
    _
  $region19: #{net_forward.1} parent=0 // pred_check_branch
    %21 = sbr.rel (0) target = $region21
  $region20: #{net_forward.1} parent=0 // pred_region
    _
  $region21: #{net_forward.1} parent=0 // pred_fallthru
    _
  %v23 = vld [vmem:[%s0] sm:$0xff]
  %v24 = vld [vmem:[%s0 + $0x8] sm:$0xff]
  %v25 = vpack.c.bf16 %v23, %v23
  %v26 = vpack.c.bf16 %v24, %v24
  %v27 = vld [vmem:[%s1] sm:$0xf]
  %v28 = vld [vmem:[%s1 + $0x4] sm:$0xf]
  %v29 = vld [vmem:[%s1 + $0x8] sm:$0xf]
  %v30 = vld [vmem:[%s1 + $0xc] sm:$0xf]
  %v31 = vld [vmem:[%s1 + $0x10] sm:$0xf]
  %v32 = vld [vmem:[%s1 + $0x14] sm:$0xf]
  %v33 = vld [vmem:[%s1 + $0x18] sm:$0xf]
  %v34 = vld [vmem:[%s1 + $0x1c] sm:$0xf]
  %v35 = vld [vmem:[%s1 + $0x20] sm:$0xf]
  %v36 = vld [vmem:[%s1 + $0x24] sm:$0xf]
  %v37 = vld [vmem:[%s1 + $0x28] sm:$0xf]
  %v38 = vld [vmem:[%s1 + $0x2c] sm:$0xf]
  %v39 = vld [vmem:[%s1 + $0x30] sm:$0xf]
  %v40 = vld [vmem:[%s1 + $0x34] sm:$0xf]
  %v41 = vld [vmem:[%s1 + $0x38] sm:$0xf]
  %v42 = vld [vmem:[%s1 + $0x3c] sm:$0xf]
  %v43 = vld [vmem:[%s1 + $0x40] sm:$0xf]
  %v44 = vld [vmem:[%s1 + $0x44] sm:$0xf]
  %v45 = vld [vmem:[%s1 + $0x48] sm:$0xf]
  %v46 = vld [vmem:[%s1 + $0x4c] sm:$0xf]
  %v47 = vld [vmem:[%s1 + $0x50] sm:$0xf]
  %v48 = vld [vmem:[%s1 + $0x54] sm:$0xf]
  %v49 = vld [vmem:[%s1 + $0x58] sm:$0xf]
  %v50 = vld [vmem:[%s1 + $0x5c] sm:$0xf]
  %v75 = vunpack.c.l.b16 %v27
  %v76 = vunpack.c.l.b16 %v28
  %v77 = vunpack.c.l.b16 %v29
  %v78 = vunpack.c.l.b16 %v30
  %v79 = vunpack.c.l.b16 %v31
  %v80 = vunpack.c.l.b16 %v32
  %v81 = vunpack.c.l.b16 %v33
  %v82 = vunpack.c.l.b16 %v34
  %v83 = vunpack.c.l.b16 %v35
  %v84 = vunpack.c.l.b16 %v36
  %v85 = vunpack.c.l.b16 %v37
  %v86 = vunpack.c.l.b16 %v38
  %v87 = vunpack.c.l.b16 %v39
  %v88 = vunpack.c.l.b16 %v40
  %v89 = vunpack.c.l.b16 %v41
  %v90 = vunpack.c.l.b16 %v42
  %v91 = vunpack.c.l.b16 %v43
  %v92 = vunpack.c.l.b16 %v44
  %v93 = vunpack.c.l.b16 %v45
  %v94 = vunpack.c.l.b16 %v46
  %v95 = vunpack.c.l.b16 %v47
  %v96 = vunpack.c.l.b16 %v48
  %v97 = vunpack.c.l.b16 %v49
  %v98 = vunpack.c.l.b16 %v50
  %v99 = vpack.c.b16 %v76, %v75
  %v100 = vpack.c.b16 %v78, %v77
  %v101 = vpack.c.b16 %v80, %v79
  %v102 = vpack.c.b16 %v82, %v81
  %v103 = vpack.c.b16 %v84, %v83
  %v104 = vpack.c.b16 %v86, %v85
  %v105 = vpack.c.b16 %v88, %v87
  %v106 = vpack.c.b16 %v90, %v89
  %v107 = vpack.c.b16 %v92, %v91
  %v108 = vpack.c.b16 %v94, %v93
  %v109 = vpack.c.b16 %v96, %v95
  %v110 = vpack.c.b16 %v98, %v97
  %vm123 = vcmask 523264
  %v125 = vsel %vm123, %v26, 0
  %127 = vmatpush.bf16.msra.mxu0 %v106
  %128 = vmatpush.bf16.msra.mxu0 %v105
  %129 = vmatpush.bf16.msra.mxu0 %v104
  %130 = vmatpush.bf16.msra.mxu0 %v103
  %131 = vmatpush.bf16.msra.mxu0 %v102
  %132 = vmatpush.bf16.msra.mxu0 %v101
  %133 = vmatpush.bf16.msra.mxu0 %v100
  %134 = vmatpush.bf16.msra.mxu0 %v99
  %135 = vmatmul.bf16.gmra.mxu0 %v25
  %v136 = vpop.f32.mrf.mxu0
  %v137 = vadd.f32 0.0, %v136
  %v138 = vpop.f32.mrf.mxu0
  %139 = vdwg.mxu0
  %140 = vmatpush.bf16.msra.mxu0 0
  %141 = vmatpush.bf16.msra.mxu0 0
  %142 = vmatpush.bf16.msra.mxu0 0
  %143 = vmatpush.bf16.msra.mxu0 0
  %144 = vmatpush.bf16.msra.mxu0 %v110
  %145 = vmatpush.bf16.msra.mxu0 %v109
  %146 = vmatpush.bf16.msra.mxu0 %v108
  %147 = vmatpush.bf16.msra.mxu0 %v107
  %148 = vmatmul.bf16.gmra.mxu0 %v125
  %v149 = vpop.f32.mrf.mxu0
  %v150 = vadd.f32 %v137, %v149
  %v151 = vpop.f32.mrf.mxu0
  %152 = vdwg.mxu0
  %154 = vrot.lane.b32.xlu0 %v150, 112
  %v155 = vpop.permute.xlu0 %154
  %v157 = vmax.f32 %v150, %v155
  %159 = vrot.lane.b32.xlu0 %v157, 96
  %v160 = vpop.permute.xlu0 %159
  %v162 = vmax.f32 %v157, %v160
  %v163 = vld [vmem:[#allocation2] sm:$0x1]
  %v165 = vperm.slane %v163, 0
  %166 = vset.pattern.permute.xlu0 0
  %167 = vperm.xlu0 %166, %v165
  %v168 = vpop.permute.xlu0 %167
  %v170 = vadd.f32 %v162, %v168
  %v171 = vmax.f32 %v170, 0.0
  %v172 = vpack.c.bf16 %v171, %v171
  %v173 = vld [vmem:[%s2] sm:$0xf]
  %v174 = vld [vmem:[%s2 + $0x4] sm:$0xf]
  %v175 = vld [vmem:[%s4] sm:$0x1]
  %v177 = vperm.slane %v175, 0
  %v181 = vunpack.c.l.b16 %v173
  %v182 = vunpack.c.l.b16 %v174
  %v183 = vpack.c.b16 %v182, %v181
  %vm185 = vcmask 130048
  %v187 = vsel %vm185, %v172, 0
  %189 = vmatpush.bf16.msra.mxu0 0
  %190 = vmatpush.bf16.msra.mxu0 0
  %191 = vmatpush.bf16.msra.mxu0 0
  %192 = vmatpush.bf16.msra.mxu0 0
  %193 = vmatpush.bf16.msra.mxu0 0
  %194 = vmatpush.bf16.msra.mxu0 0
  %195 = vmatpush.bf16.msra.mxu0 0
  %196 = vmatpush.bf16.msra.mxu0 %v183
  %197 = vmatmul.bf16.gmra.mxu0 %v187
  %v198 = vpop.f32.mrf.mxu0
  %v199 = vadd.f32 %v177, %v198
  %v200 = vpop.f32.mrf.mxu0
  %201 = vdwg.mxu0
  %v202 = vmax.f32 %v199, 0.0
  %vm203 = vcmask 15360
  %204 = vst.msk [vmem:[%s5] sm:$0xff] %vm203, %v202
  // Predicated region
  $region22: #{net_forward.1} parent=0 // pred_check
    _
  $region23: #{net_forward.1} parent=0 // pred_check_branch
    %206 = sbr.rel (0) target = $region25
  $region24: #{net_forward.1} parent=0 // pred_region
    _
  $region25: #{net_forward.1} parent=0 // pred_fallthru
    _
  // Predicated region
  $region26: #{net_forward.1} parent=0 // pred_check
    _
  $region27: #{net_forward.1} parent=0 // pred_check_branch
    %208 = sbr.rel (0) target = $region29
  $region28: #{net_forward.1} parent=0 // pred_region
    _
  $region29: #{net_forward.1} parent=0 // pred_fallthru
    _

</llo_original>
